<compile_context>
chip_gen: v6e
topology: v6e:2x2x1
jax: 0.10.0
libtpu: 0.0.40
codegen_flags: <defaults>
</compile_context>

<pallas_src>
import jax
import jax.numpy as jnp
from jax.experimental import pallas as pl
from jax.experimental.pallas import tpu as pltpu

# ---------------- configuration (small synthetic shapes) ----------------
N = 4          # batch size
S = 8          # sequence length (both sequences padded to S)
E = 16         # embd_dim
H = 32         # hidden_size
V = 50         # vocab_len
C = 3          # classes_num (> 2, so classifier outputs 3 logits)
PAD_ID = 0
LANE = 128     # lane width; 4*H == 128 and the padded logit width == 128
BP = 8         # batch block (sublane multiple); use 128/256 at production sizes


def sentence_pair_kernel(p1_ref, p2_ref, wt_ref, w1_ref, b1_ref,
                         w2p_ref, b2p_ref, out_ref):
    # p1/p2  : (BP, E+1) pooled embeddings + trailing 'valid' homogeneous column
    # wt     : (E+1, H)  embd_transform weight with the bias folded in as last row
    # w1/b1  : classifier layer 1 (4H = 128 -> H)
    # w2p/b2p: classifier layer 2 zero-padded to 128 lanes (H -> 128, cols >= C zero)
    # out    : (BP, 128) lane-dense logits block (unmasked store)
    f1 = jnp.dot(p1_ref[...], wt_ref[...],
                 preferred_element_type=jnp.float32)                  # (BP, H)
    f2 = jnp.dot(p2_ref[...], wt_ref[...],
                 preferred_element_type=jnp.float32)                  # (BP, H)

    # Feature interaction: one K = 4H = 128 contraction (full v5e MXU depth).
    feats = jnp.concatenate([f1, f2, f1 * f2, jnp.abs(f1 - f2)],
                            axis=-1)                                  # (BP, 128)
    hid = jnp.dot(feats, w1_ref[...],
                  preferred_element_type=jnp.float32) + b1_ref[...]   # (BP, H)
    hid = jnp.maximum(hid, 0.0)                                       # ReLU

    out_ref[...] = jnp.dot(hid, w2p_ref[...],
                           preferred_element_type=jnp.float32) + b2p_ref[...]


def init_params(key):
    ks = jax.random.split(key, 7)
    emb = 0.02 * jax.random.normal(ks[0], (V, E), jnp.float32)
    emb = emb.at[PAD_ID].set(0.0)                               # padding_idx -> zero row
    wt = 0.05 * jax.random.normal(ks[1], (E, H), jnp.float32)   # embd_transform (E != H)
    bt = 0.05 * jax.random.normal(ks[2], (1, H), jnp.float32)
    w1 = 0.05 * jax.random.normal(ks[3], (4 * H, H), jnp.float32)
    b1 = 0.05 * jax.random.normal(ks[4], (1, H), jnp.float32)
    w2 = 0.05 * jax.random.normal(ks[5], (H, C), jnp.float32)
    b2 = 0.05 * jax.random.normal(ks[6], (1, C), jnp.float32)
    # Bias folded into the transform weight (homogeneous coordinate trick).
    wt_aug = jnp.concatenate([wt, bt], axis=0)                  # (E+1, H)
    # Lane-dense padded copies for the kernel (columns >= C are zero).
    w2p = jnp.zeros((H, LANE), jnp.float32).at[:, :C].set(w2)
    b2p = jnp.zeros((1, LANE), jnp.float32).at[:, :C].set(b2)
    return dict(embedding=emb, wt=wt, bt=bt, wt_aug=wt_aug, w1=w1, b1=b1,
                w2=w2, b2=b2, w2p=w2p, b2p=b2p)


def sentence_pair_forward(tokens1, tokens2, mask1, mask2, params):
    n = tokens1.shape[0]
    # 'batch_pair' trick: one gather / one pooling pass over both sequences.
    tokens = jnp.concatenate([tokens1, tokens2], axis=0)               # (2N, S)
    mask = jnp.concatenate([mask1, mask2], axis=0).astype(jnp.float32) # (2N, S)

    # Embedding lookup (PAD row is zero).  Dropout: identity (inference).
    seq = jnp.take(params['embedding'], tokens, axis=0)                # (2N, S, E)
    # TODO(synk): at production vocab sizes, fuse this gather into the kernel via
    # PrefetchScalarGridSpec scalar-prefetched token ids + per-row DMA.

    # Encoder (masked-mean pooling stand-in): pre-reduce the S axis in the wrapper
    # so the kernel never sees the (2N, S, E) tensor.
    den = jnp.sum(mask, axis=1, keepdims=True)                         # (2N, 1)
    w = mask / jnp.maximum(den, 1.0)
    pooled = jnp.einsum('bse,bs->be', seq, w)                          # (2N, E)
    valid = (den > 0.0).astype(jnp.float32)                            # (2N, 1)
    pooled = jnp.concatenate([pooled, valid], axis=-1)                 # (2N, E+1)

    # Pad the batch to a sublane multiple: unmasked (BP,128) stores, tile-aligned split.
    n_pad = -(-n // BP) * BP
    pad = jnp.zeros((n_pad - n, E + 1), jnp.float32)
    p1 = jnp.concatenate([pooled[:n], pad], axis=0)                    # (NP, E+1)
    p2 = jnp.concatenate([pooled[n:], pad], axis=0)                    # (NP, E+1)

    const = lambda i: (0, 0)
    out_padded = pl.pallas_call(
        sentence_pair_kernel,
        grid=(n_pad // BP,),
        in_specs=[
            pl.BlockSpec((BP, E + 1), lambda i: (i, 0)),   # pooled seq1 block
            pl.BlockSpec((BP, E + 1), lambda i: (i, 0)),   # pooled seq2 block
            pl.BlockSpec((E + 1, H), const),               # wt_aug  (resident)
            pl.BlockSpec((4 * H, H), const),               # w1      (resident)
            pl.BlockSpec((1, H), const),                   # b1      (resident)
            pl.BlockSpec((H, LANE), const),                # w2p     (resident)
            pl.BlockSpec((1, LANE), const),                # b2p     (resident)
        ],
        out_specs=pl.BlockSpec((BP, LANE), lambda i: (i, 0)),
        out_shape=jax.ShapeDtypeStruct((n_pad, LANE), jnp.float32),
        compiler_params=pltpu.CompilerParams(
            dimension_semantics=("parallel",)),
    )(p1, p2, params['wt_aug'], params['w1'], params['b1'],
      params['w2p'], params['b2p'])

    logits = out_padded[:n, :C]
    return {'logits': logits, 'aux_loss': None}


def reference_forward(tokens1, tokens2, mask1, mask2, params):
    """Pure-JAX reference matching the PyTorch op order (transform then pool)."""
    seq1 = jnp.take(params['embedding'], tokens1, axis=0)
    seq2 = jnp.take(params['embedding'], tokens2, axis=0)
    m1 = mask1.astype(jnp.float32)
    m2 = mask2.astype(jnp.float32)
    h1 = seq1 @ params['wt'] + params['bt'][0]
    h2 = seq2 @ params['wt'] + params['bt'][0]
    p1 = (h1 * m1[:, :, None]).sum(1) / jnp.maximum(m1.sum(1, keepdims=True), 1.0)
    p2 = (h2 * m2[:, :, None]).sum(1) / jnp.maximum(m2.sum(1, keepdims=True), 1.0)
    feats = jnp.concatenate([p1, p2, p1 * p2, jnp.abs(p1 - p2)], axis=-1)
    hid = jnp.maximum(feats @ params['w1'] + params['b1'][0], 0.0)
    return hid @ params['w2'] + params['b2'][0]


if __name__ == "__main__":
    key = jax.random.PRNGKey(0)
    kp, k1, k2, kl1, kl2 = jax.random.split(key, 5)
    params = init_params(kp)

    # Deterministic synthetic batch: token ids with trailing PAD, matching masks.
    tokens1 = jax.random.randint(k1, (N, S), 1, V, dtype=jnp.int32)
    tokens2 = jax.random.randint(k2, (N, S), 1, V, dtype=jnp.int32)
    len1 = jax.random.randint(kl1, (N,), 3, S + 1, dtype=jnp.int32)
    len2 = jax.random.randint(kl2, (N,), 3, S + 1, dtype=jnp.int32)
    pos = jnp.arange(S)[None, :]
    mask1 = (pos < len1[:, None]).astype(jnp.float32)
    mask2 = (pos < len2[:, None]).astype(jnp.float32)
    tokens1 = jnp.where(mask1 > 0, tokens1, PAD_ID)
    tokens2 = jnp.where(mask2 > 0, tokens2, PAD_ID)

    out = sentence_pair_forward(tokens1, tokens2, mask1, mask2, params)
    logits = jax.block_until_ready(out['logits'])
    assert logits.shape == (N, C)
    assert out['aux_loss'] is None

    ref = reference_forward(tokens1, tokens2, mask1, mask2, params)
    assert jnp.allclose(logits, ref, atol=1e-4, rtol=1e-4), \
        f"max abs err = {jnp.max(jnp.abs(logits - ref))}"

    print("KERNEL_OK")
</pallas_src>

<mosaic_0001>
module attributes {stable_mosaic.version = 11 : i64} {
  func.func @sentence_pair_kernel(%arg0: i32, %arg1: memref<8x17xf32, #tpu.memory_space<vmem>>, %arg2: memref<8x17xf32, #tpu.memory_space<vmem>>, %arg3: memref<17x32xf32, #tpu.memory_space<vmem>>, %arg4: memref<128x32xf32, #tpu.memory_space<vmem>>, %arg5: memref<1x32xf32, #tpu.memory_space<vmem>>, %arg6: memref<32x128xf32, #tpu.memory_space<vmem>>, %arg7: memref<1x128xf32, #tpu.memory_space<vmem>>, %arg8: memref<8x128xf32, #tpu.memory_space<vmem>>) attributes {dimension_semantics = [#tpu.dimension_semantics<parallel>], iteration_bounds = array<i64: 1>, scalar_prefetch = 0 : i64, scratch_operands = 0 : i64, tpu.core_type = #tpu.core_type<tc>, window_params = [{transform_indices = @transform_0, window_bounds = array<i64: 8, 17>}, {transform_indices = @transform_1, window_bounds = array<i64: 8, 17>}, {pipeline_mode = #tpu.pipeline_mode<synchronous>, transform_indices = @transform_2, window_bounds = array<i64: 17, 32>}, {pipeline_mode = #tpu.pipeline_mode<synchronous>, transform_indices = @transform_3, window_bounds = array<i64: 128, 32>}, {pipeline_mode = #tpu.pipeline_mode<synchronous>, transform_indices = @transform_4, window_bounds = array<i64: 1, 32>}, {pipeline_mode = #tpu.pipeline_mode<synchronous>, transform_indices = @transform_5, window_bounds = array<i64: 32, 128>}, {pipeline_mode = #tpu.pipeline_mode<synchronous>, transform_indices = @transform_6, window_bounds = array<i64: 1, 128>}, {transform_indices = @transform_7, window_bounds = array<i64: 8, 128>}]} {
    %c0 = arith.constant 0 : index
    %c0_0 = arith.constant 0 : index
    %0 = vector.load %arg1[%c0, %c0_0] : memref<8x17xf32, #tpu.memory_space<vmem>>, vector<8x17xf32>
    %c0_1 = arith.constant 0 : index
    %c0_2 = arith.constant 0 : index
    %1 = vector.load %arg3[%c0_1, %c0_2] : memref<17x32xf32, #tpu.memory_space<vmem>>, vector<17x32xf32>
    %cst = arith.constant dense<0.000000e+00> : vector<8x32xf32>
    %2 = tpu.matmul %0, %1, %cst {dimension_numbers = #tpu.dot_dimension_numbers<[1], [0], [0], [1], [0, 0, 1, 1], [], []>} : vector<8x17xf32>, vector<17x32xf32>, vector<8x32xf32> -> vector<8x32xf32>
    %c0_3 = arith.constant 0 : index
    %c0_4 = arith.constant 0 : index
    %3 = vector.load %arg2[%c0_3, %c0_4] : memref<8x17xf32, #tpu.memory_space<vmem>>, vector<8x17xf32>
    %c0_5 = arith.constant 0 : index
    %c0_6 = arith.constant 0 : index
    %4 = vector.load %arg3[%c0_5, %c0_6] : memref<17x32xf32, #tpu.memory_space<vmem>>, vector<17x32xf32>
    %cst_7 = arith.constant dense<0.000000e+00> : vector<8x32xf32>
    %5 = tpu.matmul %3, %4, %cst_7 {dimension_numbers = #tpu.dot_dimension_numbers<[1], [0], [0], [1], [0, 0, 1, 1], [], []>} : vector<8x17xf32>, vector<17x32xf32>, vector<8x32xf32> -> vector<8x32xf32>
    %6 = arith.mulf %2, %5 : vector<8x32xf32>
    %7 = arith.subf %2, %5 : vector<8x32xf32>
    %8 = math.absf %7 : vector<8x32xf32>
    %9 = tpu.concatenate %2, %5, %6, %8 in 1 : vector<8x32xf32>, vector<8x32xf32>, vector<8x32xf32>, vector<8x32xf32> -> vector<8x128xf32>
    %c0_8 = arith.constant 0 : index
    %c0_9 = arith.constant 0 : index
    %10 = vector.load %arg4[%c0_8, %c0_9] : memref<128x32xf32, #tpu.memory_space<vmem>>, vector<128x32xf32>
    %cst_10 = arith.constant dense<0.000000e+00> : vector<8x32xf32>
    %11 = tpu.matmul %9, %10, %cst_10 {dimension_numbers = #tpu.dot_dimension_numbers<[1], [0], [0], [1], [0, 0, 1, 1], [], []>} : vector<8x128xf32>, vector<128x32xf32>, vector<8x32xf32> -> vector<8x32xf32>
    %c0_11 = arith.constant 0 : index
    %c0_12 = arith.constant 0 : index
    %12 = vector.load %arg5[%c0_11, %c0_12] : memref<1x32xf32, #tpu.memory_space<vmem>>, vector<1x32xf32>
    %13 = vector.broadcast %12 : vector<1x32xf32> to vector<8x32xf32>
    %14 = arith.addf %11, %13 : vector<8x32xf32>
    %cst_13 = arith.constant 0.000000e+00 : f32
    %15 = vector.broadcast %cst_13 : f32 to vector<8x32xf32>
    %16 = arith.maximumf %14, %15 : vector<8x32xf32>
    %c0_14 = arith.constant 0 : index
    %c0_15 = arith.constant 0 : index
    %17 = vector.load %arg6[%c0_14, %c0_15] : memref<32x128xf32, #tpu.memory_space<vmem>>, vector<32x128xf32>
    %cst_16 = arith.constant dense<0.000000e+00> : vector<8x128xf32>
    %18 = tpu.matmul %16, %17, %cst_16 {dimension_numbers = #tpu.dot_dimension_numbers<[1], [0], [0], [1], [0, 0, 1, 1], [], []>} : vector<8x32xf32>, vector<32x128xf32>, vector<8x128xf32> -> vector<8x128xf32>
    %c0_17 = arith.constant 0 : index
    %c0_18 = arith.constant 0 : index
    %19 = vector.load %arg7[%c0_17, %c0_18] : memref<1x128xf32, #tpu.memory_space<vmem>>, vector<1x128xf32>
    %20 = vector.broadcast %19 : vector<1x128xf32> to vector<8x128xf32>
    %21 = arith.addf %18, %20 : vector<8x128xf32>
    %c0_19 = arith.constant 0 : index
    %c0_20 = arith.constant 0 : index
    %22 = vector.load %arg8[%c0_19, %c0_20] : memref<8x128xf32, #tpu.memory_space<vmem>>, vector<8x128xf32>
    tpu.vector_store %arg8[%c0_19, %c0_20], %21 {strides = array<i32>} : memref<8x128xf32, #tpu.memory_space<vmem>>, vector<8x128xf32>,
    return
  }
  func.func @transform_0(%arg0: i32) -> (i32, i32) {
    %c0_i32 = arith.constant 0 : i32
    %c0_i32_0 = arith.constant 0 : i32
    return %arg0, %c0_i32 : i32, i32
  }
  func.func @transform_1(%arg0: i32) -> (i32, i32) {
    %c0_i32 = arith.constant 0 : i32
    %c0_i32_0 = arith.constant 0 : i32
    return %arg0, %c0_i32 : i32, i32
  }
  func.func @transform_2(%arg0: i32) -> (i32, i32) {
    %c0_i32 = arith.constant 0 : i32
    %c0_i32_0 = arith.constant 0 : i32
    %c0_i32_1 = arith.constant 0 : i32
    return %c0_i32, %c0_i32_0 : i32, i32
  }
  func.func @transform_3(%arg0: i32) -> (i32, i32) {
    %c0_i32 = arith.constant 0 : i32
    %c0_i32_0 = arith.constant 0 : i32
    %c0_i32_1 = arith.constant 0 : i32
    return %c0_i32, %c0_i32_0 : i32, i32
  }
  func.func @transform_4(%arg0: i32) -> (i32, i32) {
    %c0_i32 = arith.constant 0 : i32
    %c0_i32_0 = arith.constant 0 : i32
    %c0_i32_1 = arith.constant 0 : i32
    return %c0_i32, %c0_i32_0 : i32, i32
  }
  func.func @transform_5(%arg0: i32) -> (i32, i32) {
    %c0_i32 = arith.constant 0 : i32
    %c0_i32_0 = arith.constant 0 : i32
    %c0_i32_1 = arith.constant 0 : i32
    return %c0_i32, %c0_i32_0 : i32, i32
  }
  func.func @transform_6(%arg0: i32) -> (i32, i32) {
    %c0_i32 = arith.constant 0 : i32
    %c0_i32_0 = arith.constant 0 : i32
    %c0_i32_1 = arith.constant 0 : i32
    return %c0_i32, %c0_i32_0 : i32, i32
  }
  func.func @transform_7(%arg0: i32) -> (i32, i32) {
    %c0_i32 = arith.constant 0 : i32
    %c0_i32_0 = arith.constant 0 : i32
    return %arg0, %c0_i32 : i32, i32
  }
}

</mosaic_0001>

<llo_original>
// kernel: tpu_custom_call.1
$region0: #{tpu_custom_call.1}
  #allocation0 [shape = 'u32[]', space=smem, size = 0x4, offset = 0x4, fixed_abs, tag = 'smem constant byte address 0x4 - core index']
  #allocation1 [shape = 'u32[144,128]{1,0:T(1,128)}', space=vmem, size = 0x12000, scoped, tag = 'internal scratch']
  %s0 = inlined_call_operand.vmem [shape: f32[8,17], index: 0, kind: input, shape index: {}]
  %s1 = inlined_call_operand.vmem [shape: f32[8,17], index: 1, kind: input, shape index: {}]
  %s2 = inlined_call_operand.vmem [shape: f32[17,32], index: 2, kind: input, shape index: {}]
  %s3 = inlined_call_operand.vmem [shape: f32[128,32], index: 3, kind: input, shape index: {}]
  %s4 = inlined_call_operand.vmem [shape: f32[1,32], index: 4, kind: input, shape index: {}]
  %s5 = inlined_call_operand.vmem [shape: f32[32,128], index: 5, kind: input, shape index: {}]
  %s6 = inlined_call_operand.vmem [shape: f32[1,128], index: 6, kind: input, shape index: {}]
  %s7 = inlined_call_operand.hbm [shape: f32[8,128], index: 7, kind: output, shape index: {}]
  %s8 = sld [smem:[#allocation0]]
  $region38: #{tpu_custom_call.1} parent=0
    _
  %s10 = ssub.s32 1, %s8
  %s11 = scalar_select 0, %s10, %s8
  $region1: #{tpu_custom_call.1} parent=0
    #allocation2 [shape = 'u8[4096]{0}', space=vmem, size = 0x1000, scoped, tag = 'output window, operand 0, single buffered']
    #allocation3 [shape = 's32[1]{0}', space=sflag, size = 0x4, scoped, tag = 'scoped memory for tpu_custom_call.1']
    %12 = vsyncpa [#allocation3], 0
    // Predicated region
    $region2: #{tpu_custom_call.1} parent=1 // pred_check
      _
    $region3: #{tpu_custom_call.1} parent=1 // pred_check_branch
      %14 = sbr.rel (0) target = $region5
    $region4: #{tpu_custom_call.1} parent=1 // pred_region
      _
    $region5: #{tpu_custom_call.1} parent=1 // pred_fallthru
      _
    // Predicated region
    $region6: #{tpu_custom_call.1} parent=1 // pred_check
      _
    $region7: #{tpu_custom_call.1} parent=1 // pred_check_branch
      %16 = sbr.rel (0) target = $region9
    $region8: #{tpu_custom_call.1} parent=1 // pred_region
      _
    $region9: #{tpu_custom_call.1} parent=1 // pred_fallthru
      _
    // Predicated region
    $region10: #{tpu_custom_call.1} parent=1 // pred_check
      _
    $region11: #{tpu_custom_call.1} parent=1 // pred_check_branch
      %18 = sbr.rel (0) target = $region13
    $region12: #{tpu_custom_call.1} parent=1 // pred_region
      _
    $region13: #{tpu_custom_call.1} parent=1 // pred_fallthru
      _
    // Predicated region
    $region14: #{tpu_custom_call.1} parent=1 // pred_check
      _
    $region15: #{tpu_custom_call.1} parent=1 // pred_check_branch
      %20 = sbr.rel (0) target = $region17
    $region16: #{tpu_custom_call.1} parent=1 // pred_region
      _
    $region17: #{tpu_custom_call.1} parent=1 // pred_fallthru
      _
    // Predicated region
    $region18: #{tpu_custom_call.1} parent=1 // pred_check
      _
    $region19: #{tpu_custom_call.1} parent=1 // pred_check_branch
      %22 = sbr.rel (0) target = $region21
    $region20: #{tpu_custom_call.1} parent=1 // pred_region
      _
    $region21: #{tpu_custom_call.1} parent=1 // pred_fallthru
      _
    // Predicated region
    $region22: #{tpu_custom_call.1} parent=1 // pred_check
      _
    $region23: #{tpu_custom_call.1} parent=1 // pred_check_branch
      %24 = sbr.rel (0) target = $region25
    $region24: #{tpu_custom_call.1} parent=1 // pred_region
      _
    $region25: #{tpu_custom_call.1} parent=1 // pred_fallthru
      _
    // Predicated region
    $region26: #{tpu_custom_call.1} parent=1 // pred_check
      _
    $region27: #{tpu_custom_call.1} parent=1 // pred_check_branch
      %26 = sbr.rel (0) target = $region29
    $region28: #{tpu_custom_call.1} parent=1 // pred_region
      _
    $region29: #{tpu_custom_call.1} parent=1 // pred_fallthru
      _
    %v27 = vld [vmem:[%s0] sm:$0xff]
    %v28 = vld [vmem:[%s2] sm:$0xff]
    %v29 = vld [vmem:[%s2 + $0x8] sm:$0xff]
    %v30 = vld [vmem:[%s2 + $0x10] sm:$0x1]
    %vm31 = vcmask 138240
    %v33 = vsel %vm31, %v27, 0
    %vm35 = vcmask 1040384
    %v37 = vsel %vm35, %v30, 0
    %39 = vmatprep.subr.mxu0 0.0
    %40 = vmatpush1.msra.mxu0 0.0
    %41 = vmatprep.subr.mxu0 0.0
    %42 = vmatpush1.msra.mxu0 0.0
    %43 = vmatprep.subr.mxu0 0.0
    %44 = vmatpush1.msra.mxu0 0.0
    %45 = vmatprep.subr.mxu0 0.0
    %46 = vmatpush1.msra.mxu0 0.0
    %47 = vmatprep.subr.mxu0 0.0
    %48 = vmatpush1.msra.mxu0 0.0
    %49 = vmatprep.subr.mxu0 0.0
    %50 = vmatpush1.msra.mxu0 0.0
    %51 = vmatprep.subr.mxu0 0.0
    %52 = vmatpush1.msra.mxu0 0.0
    %53 = vmatprep.subr.mxu0 0.0
    %54 = vmatpush1.msra.mxu0 0.0
    %55 = vmatprep.subr.mxu0 0.0
    %56 = vmatpush1.msra.mxu0 0.0
    %57 = vmatprep.subr.mxu0 0.0
    %58 = vmatpush1.msra.mxu0 0.0
    %59 = vmatprep.subr.mxu0 0.0
    %60 = vmatpush1.msra.mxu0 0.0
    %61 = vmatprep.subr.mxu0 0.0
    %62 = vmatpush1.msra.mxu0 0.0
    %63 = vmatprep.subr.mxu0 0.0
    %64 = vmatpush1.msra.mxu0 0.0
    %65 = vmatprep.subr.mxu0 0.0
    %66 = vmatpush1.msra.mxu0 %v37
    %67 = vmatprep.subr.mxu0 0.0
    %68 = vmatpush1.msra.mxu0 %v29
    %69 = vmatprep.subr.mxu0 0.0
    %70 = vmatpush1.msra.mxu0 %v28
    %71 = vmatprep.subr.mxu0 0.0
    %72 = vmatpush2.msra.mxu0 0.0
    %73 = vmatprep.subr.mxu0 0.0
    %74 = vmatpush2.msra.mxu0 0.0
    %75 = vmatprep.subr.mxu0 0.0
    %76 = vmatpush2.msra.mxu0 0.0
    %77 = vmatprep.subr.mxu0 0.0
    %78 = vmatpush2.msra.mxu0 0.0
    %79 = vmatprep.subr.mxu0 0.0
    %80 = vmatpush2.msra.mxu0 0.0
    %81 = vmatprep.subr.mxu0 0.0
    %82 = vmatpush2.msra.mxu0 0.0
    %83 = vmatprep.subr.mxu0 0.0
    %84 = vmatpush2.msra.mxu0 0.0
    %85 = vmatprep.subr.mxu0 0.0
    %86 = vmatpush2.msra.mxu0 0.0
    %87 = vmatprep.subr.mxu0 0.0
    %88 = vmatpush2.msra.mxu0 0.0
    %89 = vmatprep.subr.mxu0 0.0
    %90 = vmatpush2.msra.mxu0 0.0
    %91 = vmatprep.subr.mxu0 0.0
    %92 = vmatpush2.msra.mxu0 0.0
    %93 = vmatprep.subr.mxu0 0.0
    %94 = vmatpush2.msra.mxu0 0.0
    %95 = vmatprep.subr.mxu0 0.0
    %96 = vmatpush2.msra.mxu0 0.0
    %97 = vmatprep.subr.mxu0 0.0
    %98 = vmatpush2.msra.mxu0 0.0
    %99 = vmatprep.subr.mxu0 0.0
    %100 = vmatpush2.msra.mxu0 0.0
    %101 = vmatprep.subr.mxu0 0.0
    %102 = vmatpush2.msra.mxu0 0.0
    %103 = vmatprep.mubr.f32.mxu0 0.0
    %104 = vmatmul.mubr.f32.gmra.mxu0 %v33
    %v105 = vpop.f32.mrf.mxu0
    %v106 = vadd.f32 0.0, %v105
    %v107 = vpop.f32.mrf.mxu0
    %108 = vdwg.mxu0
    %v109 = vld [vmem:[%s1] sm:$0xff]
    %v111 = vsel %vm31, %v109, 0
    %113 = vmatprep.subr.mxu0 0.0
    %114 = vmatpush1.msra.mxu0 0.0
    %115 = vmatprep.subr.mxu0 0.0
    %116 = vmatpush1.msra.mxu0 0.0
    %117 = vmatprep.subr.mxu0 0.0
    %118 = vmatpush1.msra.mxu0 0.0
    %119 = vmatprep.subr.mxu0 0.0
    %120 = vmatpush1.msra.mxu0 0.0
    %121 = vmatprep.subr.mxu0 0.0
    %122 = vmatpush1.msra.mxu0 0.0
    %123 = vmatprep.subr.mxu0 0.0
    %124 = vmatpush1.msra.mxu0 0.0
    %125 = vmatprep.subr.mxu0 0.0
    %126 = vmatpush1.msra.mxu0 0.0
    %127 = vmatprep.subr.mxu0 0.0
    %128 = vmatpush1.msra.mxu0 0.0
    %129 = vmatprep.subr.mxu0 0.0
    %130 = vmatpush1.msra.mxu0 0.0
    %131 = vmatprep.subr.mxu0 0.0
    %132 = vmatpush1.msra.mxu0 0.0
    %133 = vmatprep.subr.mxu0 0.0
    %134 = vmatpush1.msra.mxu0 0.0
    %135 = vmatprep.subr.mxu0 0.0
    %136 = vmatpush1.msra.mxu0 0.0
    %137 = vmatprep.subr.mxu0 0.0
    %138 = vmatpush1.msra.mxu0 0.0
    %139 = vmatprep.subr.mxu0 0.0
    %140 = vmatpush1.msra.mxu0 %v37
    %141 = vmatprep.subr.mxu0 0.0
    %142 = vmatpush1.msra.mxu0 %v29
    %143 = vmatprep.subr.mxu0 0.0
    %144 = vmatpush1.msra.mxu0 %v28
    %145 = vmatprep.subr.mxu0 0.0
    %146 = vmatpush2.msra.mxu0 0.0
    %147 = vmatprep.subr.mxu0 0.0
    %148 = vmatpush2.msra.mxu0 0.0
    %149 = vmatprep.subr.mxu0 0.0
    %150 = vmatpush2.msra.mxu0 0.0
    %151 = vmatprep.subr.mxu0 0.0
    %152 = vmatpush2.msra.mxu0 0.0
    %153 = vmatprep.subr.mxu0 0.0
    %154 = vmatpush2.msra.mxu0 0.0
    %155 = vmatprep.subr.mxu0 0.0
    %156 = vmatpush2.msra.mxu0 0.0
    %157 = vmatprep.subr.mxu0 0.0
    %158 = vmatpush2.msra.mxu0 0.0
    %159 = vmatprep.subr.mxu0 0.0
    %160 = vmatpush2.msra.mxu0 0.0
    %161 = vmatprep.subr.mxu0 0.0
    %162 = vmatpush2.msra.mxu0 0.0
    %163 = vmatprep.subr.mxu0 0.0
    %164 = vmatpush2.msra.mxu0 0.0
    %165 = vmatprep.subr.mxu0 0.0
    %166 = vmatpush2.msra.mxu0 0.0
    %167 = vmatprep.subr.mxu0 0.0
    %168 = vmatpush2.msra.mxu0 0.0
    %169 = vmatprep.subr.mxu0 0.0
    %170 = vmatpush2.msra.mxu0 0.0
    %171 = vmatprep.subr.mxu0 0.0
    %172 = vmatpush2.msra.mxu0 0.0
    %173 = vmatprep.subr.mxu0 0.0
    %174 = vmatpush2.msra.mxu0 0.0
    %175 = vmatprep.subr.mxu0 0.0
    %176 = vmatpush2.msra.mxu0 0.0
    %177 = vmatprep.mubr.f32.mxu0 0.0
    %178 = vmatmul.mubr.f32.gmra.mxu0 %v111
    %v179 = vpop.f32.mrf.mxu0
    %v180 = vadd.f32 0.0, %v179
    %v181 = vpop.f32.mrf.mxu0
    %182 = vdwg.mxu0
    %v183 = vmul.f32 %v106, %v180
    %v184 = vsub.f32 %v106, %v180
    %v185 = vand.u32 2147483647, %v184
    %187 = vrot.lane.b32.xlu0 %v180, 32
    %v188 = vpop.permute.xlu0 %187
    %191 = vrot.lane.b32.xlu0 %v183, 64
    %v192 = vpop.permute.xlu0 %191
    %195 = vrot.lane.b32.xlu0 %v185, 96
    %v196 = vpop.permute.xlu0 %195
    %vm198 = vcmask 261120
    %v199 = vsel %vm198, %v106, %v188
    %vm200 = vcmask 523264
    %v201 = vsel %vm200, %v199, %v192
    %vm202 = vcmask 785408
    %v203 = vsel %vm202, %v201, %v196
    %v204 = vld [vmem:[%s3] sm:$0xff]
    %v205 = vld [vmem:[%s3 + $0x8] sm:$0xff]
    %v206 = vld [vmem:[%s3 + $0x10] sm:$0xff]
    %v207 = vld [vmem:[%s3 + $0x18] sm:$0xff]
    %v208 = vld [vmem:[%s3 + $0x20] sm:$0xff]
    %v209 = vld [vmem:[%s3 + $0x28] sm:$0xff]
    %v210 = vld [vmem:[%s3 + $0x30] sm:$0xff]
    %v211 = vld [vmem:[%s3 + $0x38] sm:$0xff]
    %v212 = vld [vmem:[%s3 + $0x40] sm:$0xff]
    %v213 = vld [vmem:[%s3 + $0x48] sm:$0xff]
    %v214 = vld [vmem:[%s3 + $0x50] sm:$0xff]
    %v215 = vld [vmem:[%s3 + $0x58] sm:$0xff]
    %v216 = vld [vmem:[%s3 + $0x60] sm:$0xff]
    %v217 = vld [vmem:[%s3 + $0x68] sm:$0xff]
    %v218 = vld [vmem:[%s3 + $0x70] sm:$0xff]
    %v219 = vld [vmem:[%s3 + $0x78] sm:$0xff]
    %v220 = vld [vmem:[%s4] sm:$0x1]
    %v222 = vlaneseq
    %v223 = vshrl.u32 %v222, 7
    %v224 = vsub.s32 0, %v223
    %v225 = vrot.slane %v220, %v224
    %227 = vmatprep.subr.mxu0 0.0
    %228 = vmatpush1.msra.mxu0 %v219
    %229 = vmatprep.subr.mxu0 0.0
    %230 = vmatpush1.msra.mxu0 %v218
    %231 = vmatprep.subr.mxu0 0.0
    %232 = vmatpush1.msra.mxu0 %v217
    %233 = vmatprep.subr.mxu0 0.0
    %234 = vmatpush1.msra.mxu0 %v216
    %235 = vmatprep.subr.mxu0 0.0
    %236 = vmatpush1.msra.mxu0 %v215
    %237 = vmatprep.subr.mxu0 0.0
    %238 = vmatpush1.msra.mxu0 %v214
    %239 = vmatprep.subr.mxu0 0.0
    %240 = vmatpush1.msra.mxu0 %v213
    %241 = vmatprep.subr.mxu0 0.0
    %242 = vmatpush1.msra.mxu0 %v212
    %243 = vmatprep.subr.mxu0 0.0
    %244 = vmatpush1.msra.mxu0 %v211
    %245 = vmatprep.subr.mxu0 0.0
    %246 = vmatpush1.msra.mxu0 %v210
    %247 = vmatprep.subr.mxu0 0.0
    %248 = vmatpush1.msra.mxu0 %v209
    %249 = vmatprep.subr.mxu0 0.0
    %250 = vmatpush1.msra.mxu0 %v208
    %251 = vmatprep.subr.mxu0 0.0
    %252 = vmatpush1.msra.mxu0 %v207
    %253 = vmatprep.subr.mxu0 0.0
    %254 = vmatpush1.msra.mxu0 %v206
    %255 = vmatprep.subr.mxu0 0.0
    %256 = vmatpush1.msra.mxu0 %v205
    %257 = vmatprep.subr.mxu0 0.0
    %258 = vmatpush1.msra.mxu0 %v204
    %259 = vmatprep.subr.mxu0 0.0
    %260 = vmatpush2.msra.mxu0 0.0
    %261 = vmatprep.subr.mxu0 0.0
    %262 = vmatpush2.msra.mxu0 0.0
    %263 = vmatprep.subr.mxu0 0.0
    %264 = vmatpush2.msra.mxu0 0.0
    %265 = vmatprep.subr.mxu0 0.0
    %266 = vmatpush2.msra.mxu0 0.0
    %267 = vmatprep.subr.mxu0 0.0
    %268 = vmatpush2.msra.mxu0 0.0
    %269 = vmatprep.subr.mxu0 0.0
    %270 = vmatpush2.msra.mxu0 0.0
    %271 = vmatprep.subr.mxu0 0.0
    %272 = vmatpush2.msra.mxu0 0.0
    %273 = vmatprep.subr.mxu0 0.0
    %274 = vmatpush2.msra.mxu0 0.0
    %275 = vmatprep.subr.mxu0 0.0
    %276 = vmatpush2.msra.mxu0 0.0
    %277 = vmatprep.subr.mxu0 0.0
    %278 = vmatpush2.msra.mxu0 0.0
    %279 = vmatprep.subr.mxu0 0.0
    %280 = vmatpush2.msra.mxu0 0.0
    %281 = vmatprep.subr.mxu0 0.0
    %282 = vmatpush2.msra.mxu0 0.0
    %283 = vmatprep.subr.mxu0 0.0
    %284 = vmatpush2.msra.mxu0 0.0
    %285 = vmatprep.subr.mxu0 0.0
    %286 = vmatpush2.msra.mxu0 0.0
    %287 = vmatprep.subr.mxu0 0.0
    %288 = vmatpush2.msra.mxu0 0.0
    %289 = vmatprep.subr.mxu0 0.0
    %290 = vmatpush2.msra.mxu0 0.0
    %291 = vmatprep.mubr.f32.mxu0 0.0
    %292 = vmatmul.mubr.f32.gmra.mxu0 %v203
    %v293 = vpop.f32.mrf.mxu0
    %v294 = vadd.f32 %v225, %v293
    %v295 = vpop.f32.mrf.mxu0
    %296 = vdwg.mxu0
    %v297 = vmax.f32 %v294, 0.0
    %v298 = vld [vmem:[%s5] sm:$0xff]
    %v299 = vld [vmem:[%s5 + $0x8] sm:$0xff]
    %v300 = vld [vmem:[%s5 + $0x10] sm:$0xff]
    %v301 = vld [vmem:[%s5 + $0x18] sm:$0xff]
    %v302 = vld [vmem:[%s6] sm:$0x1]
    %v304 = vlaneseq
    %v305 = vshrl.u32 %v304, 7
    %v306 = vsub.s32 0, %v305
    %v307 = vrot.slane %v302, %v306
    %v310 = vsel %vm198, %v297, 0
    %312 = vmatprep.subr.mxu0 0.0
    %313 = vmatpush1.msra.mxu0 0.0
    %314 = vmatprep.subr.mxu0 0.0
    %315 = vmatpush1.msra.mxu0 0.0
    %316 = vmatprep.subr.mxu0 0.0
    %317 = vmatpush1.msra.mxu0 0.0
    %318 = vmatprep.subr.mxu0 0.0
    %319 = vmatpush1.msra.mxu0 0.0
    %320 = vmatprep.subr.mxu0 0.0
    %321 = vmatpush1.msra.mxu0 0.0
    %322 = vmatprep.subr.mxu0 0.0
    %323 = vmatpush1.msra.mxu0 0.0
    %324 = vmatprep.subr.mxu0 0.0
    %325 = vmatpush1.msra.mxu0 0.0
    %326 = vmatprep.subr.mxu0 0.0
    %327 = vmatpush1.msra.mxu0 0.0
    %328 = vmatprep.subr.mxu0 0.0
    %329 = vmatpush1.msra.mxu0 0.0
    %330 = vmatprep.subr.mxu0 0.0
    %331 = vmatpush1.msra.mxu0 0.0
    %332 = vmatprep.subr.mxu0 0.0
    %333 = vmatpush1.msra.mxu0 0.0
    %334 = vmatprep.subr.mxu0 0.0
    %335 = vmatpush1.msra.mxu0 0.0
    %336 = vmatprep.subr.mxu0 0.0
    %337 = vmatpush1.msra.mxu0 %v301
    %338 = vmatprep.subr.mxu0 0.0
    %339 = vmatpush1.msra.mxu0 %v300
    %340 = vmatprep.subr.mxu0 0.0
    %341 = vmatpush1.msra.mxu0 %v299
    %342 = vmatprep.subr.mxu0 0.0
    %343 = vmatpush1.msra.mxu0 %v298
    %344 = vmatprep.subr.mxu0 0.0
    %345 = vmatpush2.msra.mxu0 0.0
    %346 = vmatprep.subr.mxu0 0.0
    %347 = vmatpush2.msra.mxu0 0.0
    %348 = vmatprep.subr.mxu0 0.0
    %349 = vmatpush2.msra.mxu0 0.0
    %350 = vmatprep.subr.mxu0 0.0
    %351 = vmatpush2.msra.mxu0 0.0
    %352 = vmatprep.subr.mxu0 0.0
    %353 = vmatpush2.msra.mxu0 0.0
    %354 = vmatprep.subr.mxu0 0.0
    %355 = vmatpush2.msra.mxu0 0.0
    %356 = vmatprep.subr.mxu0 0.0
    %357 = vmatpush2.msra.mxu0 0.0
    %358 = vmatprep.subr.mxu0 0.0
    %359 = vmatpush2.msra.mxu0 0.0
    %360 = vmatprep.subr.mxu0 0.0
    %361 = vmatpush2.msra.mxu0 0.0
    %362 = vmatprep.subr.mxu0 0.0
    %363 = vmatpush2.msra.mxu0 0.0
    %364 = vmatprep.subr.mxu0 0.0
    %365 = vmatpush2.msra.mxu0 0.0
    %366 = vmatprep.subr.mxu0 0.0
    %367 = vmatpush2.msra.mxu0 0.0
    %368 = vmatprep.subr.mxu0 0.0
    %369 = vmatpush2.msra.mxu0 0.0
    %370 = vmatprep.subr.mxu0 0.0
    %371 = vmatpush2.msra.mxu0 0.0
    %372 = vmatprep.subr.mxu0 0.0
    %373 = vmatpush2.msra.mxu0 0.0
    %374 = vmatprep.subr.mxu0 0.0
    %375 = vmatpush2.msra.mxu0 0.0
    %376 = vmatprep.mubr.f32.mxu0 0.0
    %377 = vmatmul.mubr.f32.gmra.mxu0 %v310
    %v378 = vpop.f32.mrf.mxu0
    %v379 = vadd.f32 %v307, %v378
    %v380 = vpop.f32.mrf.mxu0
    %381 = vdwg.mxu0
    %382 = vst [vmem:[#allocation2] sm:$0xff] %v379
    // Predicated region
    $region30: #{tpu_custom_call.1} parent=1 // pred_check
      _
    $region31: #{tpu_custom_call.1} parent=1 // pred_check_branch
      %384 = sbr.rel (0) target = $region33
    $region32: #{tpu_custom_call.1} parent=1 // pred_region
      %s386 = ssub.s32 128, 128
      %387 = vsyncadd [#allocation3], %s386
      %s389 = sshll.u32 [#allocation2], 4
      %s390 = int_to_ptr.vmem [resolvable:$true] %s389
      %392 = dma.vmem_to_hbm [thread:$0]  %s390, 128, %s7, [#allocation3]
    $region33: #{tpu_custom_call.1} parent=1 // pred_fallthru
      _
    // Predicated region
    $region34: #{tpu_custom_call.1} parent=1 // pred_check
      _
    $region35: #{tpu_custom_call.1} parent=1 // pred_check_branch
      %394 = sbr.rel (0) target = $region37
    $region36: #{tpu_custom_call.1} parent=1 // pred_region
      %395 = dma.done [#allocation3], 128
    $region37: #{tpu_custom_call.1} parent=1 // pred_fallthru
      _
    %396 = vsyncpa [#allocation3], 1

</llo_original>
